<compile_context>
chip_gen: v5e
topology: v5e:2x2
jax: 0.10.0
libtpu: 0.0.40
codegen_flags: <defaults>
</compile_context>

<pallas_src>
import functools

import jax
import jax.numpy as jnp
from jax.experimental import pallas as pl
from jax.experimental.pallas import tpu as pltpu


def _batch_criterion_kernel(x_tile_ref, x_pair_ref, xt_ref, pmt_ref, per_row_ref,
                            *, negM, T, half, matmul_dtype, transcendental_dtype):
    tm = x_tile_ref.shape[0]           # rows in this tile
    B = xt_ref.shape[1]                # total rows
    f32 = jnp.float32
    inv_T = f32(1.0 / T)
    low_eup = jnp.dtype(transcendental_dtype) != jnp.dtype(jnp.float32)

    x_tile = x_tile_ref[...]                                            # (tm, D) f32

    # Positive-pair and self-similarity terms from small (tm, D) row dots.
    pos = jnp.exp(jnp.sum(x_tile * x_pair_ref[...], axis=1, keepdims=True) * inv_T)
    diag_e = jnp.exp(jnp.sum(x_tile * x_tile, axis=1, keepdims=True) * inv_T)

    # (tm, D) @ (D, B) NN matmul; 1/T folded into the small LHS operand
    # (B*D muls instead of B^2 divs).  RHS is already in matmul_dtype.
    lhs = (x_tile * inv_T).astype(matmul_dtype)
    sim = jax.lax.dot_general(lhs, xt_ref[...], (((1,), (0,)), ((), ())),
                              preferred_element_type=f32)               # (tm, B)

    # exp is half of the EUP load; optionally run it at reduced precision
    # (bf16 EUP on v6e/v7x) while keeping reductions and the division in f32.
    if low_eup:
        e = jnp.exp(sim.astype(transcendental_dtype)).astype(f32)
    else:
        e = jnp.exp(sim)

    # Diagonal excluded analytically via the VPU-computed diag term.
    row_sum = jnp.sum(e, axis=1, keepdims=True) - diag_e                # (tm, 1)
    if negM == 1.0:
        all_div = row_sum
    else:
        all_div = (row_sum - pos) * negM + pos

    inv_div = 1.0 / all_div            # one exact divide per row
    pmt = pos * inv_div                # == exp(lnPmt)

    # lnPon_i = sum_{j not in {i, pair(i)}} log(1 - e_ij / all_div_i).
    # (Equivalent to the reference: its pair term cancels exactly with the
    #  -log(1 - pmt_i) it subtracts.)  Diagonal/pair entries may produce NaN
    #  inside the log; the select discards those lanes (never restructure this
    #  into "sum all then subtract").
    row0 = pl.program_id(0) * tm
    rows = row0 + jax.lax.broadcasted_iota(jnp.int32, (tm, B), 0)
    cols = jax.lax.broadcasted_iota(jnp.int32, (tm, B), 1)
    excl = (cols == rows) | (cols == rows + half) | (cols == rows - half)

    # log stays f32: for negatives the argument is 1 - (tiny), which bf16
    # cannot resolve.
    ln_neg = jnp.log(1.0 - e * inv_div)                                 # (tm, B)
    ln_pon = jnp.sum(jnp.where(excl, 0.0, ln_neg), axis=1, keepdims=True)
    ln_pmt = jnp.log(pmt)

    pmt_ref[...] = pmt
    per_row_ref[...] = ln_pmt + negM * ln_pon          # loss = -sum(per_row)/B


def _max_row_tile_for_device():
    # v5e/v5p have a 128-wide MXU; v6e/v7x are 256-wide.
    try:
        kind = jax.devices()[0].device_kind.lower()
    except Exception:
        return 256
    return 128 if "v5" in kind else 256


def _pick_row_tile(B, *, max_tm=256, live_temps=6, temp_budget_bytes=8 << 20):
    """Largest aligned row tile dividing B, capped by the (tm,B) working set."""
    cap = min(max_tm, max(8, temp_budget_bytes // (live_temps * 4 * max(B, 1))))
    for tm in (256, 128, 64, 32, 16, 8):
        if tm <= cap and B % tm == 0:
            return tm
    return B          # tiny / irregular B: single tile covering the full array


def _vmem_limit_bytes(B, D, tm, matmul_itemsize):
    resident = D * B * matmul_itemsize          # x_t, single-buffered
    row_tiles = 2 * 2 * tm * D * 4              # x tile + pair tile, double-buffered
    outs = 2 * 2 * tm * 4
    temps = 6 * tm * B * 4                      # live (tm, B) f32 temporaries
    need = resident + row_tiles + outs + temps
    return int(min(64 << 20, max(32 << 20, 2 * need)))


def batch_criterion(x, negM, T, *, matmul_dtype=jnp.float32,
                    transcendental_dtype=jnp.float32):
    """Pallas implementation of BatchCriterion.forward.

    Args:
      x: (B, D) features, B = 2 * batchSize (two augmented views stacked).
      negM, T: hyper-parameters from the module constructor.
      matmul_dtype: MXU operand dtype (bf16 on v6e/v7x when the extra
        similarity error is tolerable); the resident RHS is cast once in HBM.
      transcendental_dtype: dtype for the dominant exp pass (bf16 on v6e/v7x
        when the accuracy budget allows; exp() at T=0.1 amplifies error, so
        the default stays f32).

    Returns:
      (loss: scalar float32, pmt: (B,) float32)  == (loss, torch.exp(lnPmt))
    """
    x = x.astype(jnp.float32)
    B, D = x.shape
    half = B // 2
    tm = _pick_row_tile(B, max_tm=_max_row_tile_for_device())
    n_tiles = B // tm

    # Reordered views (the positive pairs) and the pre-transposed resident RHS
    # are built once in HBM; both are O(B*D), amortized over all B/TM steps.
    x_pair = jnp.concatenate([x[half:], x[:half]], axis=0)              # (B, D)
    x_t = jnp.transpose(x).astype(matmul_dtype)                         # (D, B)

    kernel = functools.partial(
        _batch_criterion_kernel, negM=float(negM), T=float(T), half=half,
        matmul_dtype=matmul_dtype, transcendental_dtype=transcendental_dtype)

    pmt, per_row = pl.pallas_call(
        kernel,
        out_shape=(
            jax.ShapeDtypeStruct((B, 1), jnp.float32),   # pmt (column layout)
            jax.ShapeDtypeStruct((B, 1), jnp.float32),   # lnPmt + negM*lnPon
        ),
        grid_spec=pltpu.PrefetchScalarGridSpec(
            num_scalar_prefetch=0,
            grid=(n_tiles,),
            in_specs=[
                pl.BlockSpec((tm, D), lambda i: (i, 0)),   # row tile of x
                pl.BlockSpec((tm, D), lambda i: (i, 0)),   # paired-row tile
                pl.BlockSpec((D, B), lambda i: (0, 0),     # resident x^T
                             pipeline_mode=pl.Buffered(1)),
            ],
            out_specs=(
                pl.BlockSpec((tm, 1), lambda i: (i, 0)),
                pl.BlockSpec((tm, 1), lambda i: (i, 0)),
            ),
        ),
        compiler_params=pltpu.CompilerParams(
            dimension_semantics=("parallel",),
            vmem_limit_bytes=_vmem_limit_bytes(
                B, D, tm, jnp.dtype(matmul_dtype).itemsize)),
    )(x, x_pair, x_t)

    # Tiny O(B) reduction done in the wrapper so the row axis stays "parallel".
    loss = -jnp.sum(per_row[:, 0]) / B
    return loss, pmt[:, 0]


def batch_criterion_ref(x, negM, T):
    """Pure-JAX reference following the torch code line by line."""
    B = x.shape[0]
    half = B // 2
    reordered = jnp.concatenate([x[half:], x[:half]], axis=0)
    pos = jnp.exp(jnp.sum(x * reordered, axis=1) / T)
    sim = jnp.matmul(x, x.T, precision=jax.lax.Precision.HIGHEST)
    all_prob = jnp.exp(sim / T) * (1.0 - jnp.eye(B, dtype=x.dtype))
    if negM == 1.0:
        all_div = all_prob.sum(1)
    else:
        all_div = (all_prob.sum(1) - pos) * negM + pos
    pmt = pos / all_div
    ln_pon = jnp.log(1.0 - all_prob / all_div[:, None]).sum(1) - jnp.log(1.0 - pmt)
    ln_pmt = jnp.log(pmt)
    loss = -(ln_pmt.sum() + negM * ln_pon.sum()) / B
    return loss, pmt


if __name__ == "__main__":
    # Constructor params: batchSize (pairs) = 4 -> B = 8 rows, T = 0.1.
    batchSize = 4
    B = 2 * batchSize
    D = 32
    T = 0.1

    key = jax.random.PRNGKey(0)
    k1, k2 = jax.random.split(key)
    v = jax.random.normal(k1, (batchSize, D), dtype=jnp.float32)
    v = v / jnp.linalg.norm(v, axis=1, keepdims=True)
    # Second half = perturbed copy of the first half (augmented views of the
    # same samples), as in the module's intended use; keeps the positive term
    # dominant so log(1 - p) stays finite for negM < 1.
    w = v + 0.1 * jax.random.normal(k2, (batchSize, D), dtype=jnp.float32)
    w = w / jnp.linalg.norm(w, axis=1, keepdims=True)
    x = jnp.concatenate([v, w], axis=0)                      # (B, D)

    for negM in (1.0, 0.5):                                  # both module branches
        loss, pmt = batch_criterion(x, negM, T)
        loss = jax.block_until_ready(loss)
        pmt = jax.block_until_ready(pmt)

        loss_ref, pmt_ref = batch_criterion_ref(x, negM, T)
        assert bool(jnp.isfinite(loss)) and bool(jnp.all(jnp.isfinite(pmt))), (
            negM, loss)
        assert jnp.allclose(loss, loss_ref, rtol=1e-4, atol=1e-4), (
            negM, loss, loss_ref)
        assert jnp.allclose(pmt, pmt_ref, rtol=1e-4, atol=1e-4), (
            negM, pmt, pmt_ref)

    print("KERNEL_OK")
</pallas_src>

<mosaic_0001>
module attributes {stable_mosaic.version = 11 : i64} {
  func.func @_batch_criterion_kernel(%arg0: i32, %arg1: memref<8x32xf32, #tpu.memory_space<vmem>>, %arg2: memref<8x32xf32, #tpu.memory_space<vmem>>, %arg3: memref<32x8xf32, #tpu.memory_space<vmem>>, %arg4: memref<8x1xf32, #tpu.memory_space<vmem>>, %arg5: memref<8x1xf32, #tpu.memory_space<vmem>>) attributes {dimension_semantics = [#tpu.dimension_semantics<parallel>], iteration_bounds = array<i64: 1>, scalar_prefetch = 0 : i64, scratch_operands = 0 : i64, tpu.core_type = #tpu.core_type<tc>, window_params = [{transform_indices = @transform_0, window_bounds = array<i64: 8, 32>}, {transform_indices = @transform_1, window_bounds = array<i64: 8, 32>}, {pipeline_mode = #tpu.pipeline_mode<synchronous>, transform_indices = @transform_2, window_bounds = array<i64: 32, 8>}, {transform_indices = @transform_3, window_bounds = array<i64: 8, 1>}, {transform_indices = @transform_4, window_bounds = array<i64: 8, 1>}]} {
    %c0 = arith.constant 0 : index
    %c0_0 = arith.constant 0 : index
    %0 = vector.load %arg1[%c0, %c0_0] : memref<8x32xf32, #tpu.memory_space<vmem>>, vector<8x32xf32>
    %c0_1 = arith.constant 0 : index
    %c0_2 = arith.constant 0 : index
    %1 = vector.load %arg2[%c0_1, %c0_2] : memref<8x32xf32, #tpu.memory_space<vmem>>, vector<8x32xf32>
    %2 = arith.mulf %0, %1 : vector<8x32xf32>
    %cst = arith.constant dense<0.000000e+00> : vector<8xf32>
    %3 = vector.multi_reduction <add>, %2, %cst [1] : vector<8x32xf32> to vector<8xf32>
    %4 = vector.shape_cast %3 : vector<8xf32> to vector<8x1xf32>
    %cst_3 = arith.constant 1.000000e+01 : f32
    %5 = vector.broadcast %cst_3 : f32 to vector<8x1xf32>
    %6 = arith.mulf %4, %5 : vector<8x1xf32>
    %7 = math.exp %6 : vector<8x1xf32>
    %8 = arith.mulf %0, %0 : vector<8x32xf32>
    %cst_4 = arith.constant dense<0.000000e+00> : vector<8xf32>
    %9 = vector.multi_reduction <add>, %8, %cst_4 [1] : vector<8x32xf32> to vector<8xf32>
    %10 = vector.shape_cast %9 : vector<8xf32> to vector<8x1xf32>
    %cst_5 = arith.constant 1.000000e+01 : f32
    %11 = vector.broadcast %cst_5 : f32 to vector<8x1xf32>
    %12 = arith.mulf %10, %11 : vector<8x1xf32>
    %13 = math.exp %12 : vector<8x1xf32>
    %cst_6 = arith.constant 1.000000e+01 : f32
    %14 = vector.broadcast %cst_6 : f32 to vector<8x32xf32>
    %15 = arith.mulf %0, %14 : vector<8x32xf32>
    %c0_7 = arith.constant 0 : index
    %c0_8 = arith.constant 0 : index
    %16 = vector.load %arg3[%c0_7, %c0_8] : memref<32x8xf32, #tpu.memory_space<vmem>>, vector<32x8xf32>
    %cst_9 = arith.constant dense<0.000000e+00> : vector<8x8xf32>
    %17 = tpu.matmul %15, %16, %cst_9 {dimension_numbers = #tpu.dot_dimension_numbers<[1], [0], [0], [1], [0, 0, 1, 1], [], []>} : vector<8x32xf32>, vector<32x8xf32>, vector<8x8xf32> -> vector<8x8xf32>
    %18 = math.exp %17 : vector<8x8xf32>
    %cst_10 = arith.constant dense<0.000000e+00> : vector<8xf32>
    %19 = vector.multi_reduction <add>, %18, %cst_10 [1] : vector<8x8xf32> to vector<8xf32>
    %20 = vector.shape_cast %19 : vector<8xf32> to vector<8x1xf32>
    %21 = arith.subf %20, %13 : vector<8x1xf32>
    %cst_11 = arith.constant 1.000000e+00 : f32
    %22 = vector.broadcast %cst_11 : f32 to vector<8x1xf32>
    %23 = arith.divf %22, %21 : vector<8x1xf32>
    %24 = arith.mulf %7, %23 : vector<8x1xf32>
    %c8_i32 = arith.constant 8 : i32
    %25 = arith.muli %arg0, %c8_i32 : i32
    %26 = tpu.iota {dimensions = array<i32: 0>} : vector<8x8xi32>
    %27 = vector.broadcast %25 : i32 to vector<8x8xi32>
    %28 = arith.addi %27, %26 : vector<8x8xi32>
    %29 = tpu.iota {dimensions = array<i32: 1>} : vector<8x8xi32>
    %30 = arith.cmpi eq, %29, %28 : vector<8x8xi32>
    %c4_i32 = arith.constant 4 : i32
    %31 = vector.broadcast %c4_i32 : i32 to vector<8x8xi32>
    %32 = arith.addi %28, %31 : vector<8x8xi32>
    %33 = arith.cmpi eq, %29, %32 : vector<8x8xi32>
    %34 = arith.ori %30, %33 : vector<8x8xi1>
    %c4_i32_12 = arith.constant 4 : i32
    %35 = vector.broadcast %c4_i32_12 : i32 to vector<8x8xi32>
    %36 = arith.subi %28, %35 : vector<8x8xi32>
    %37 = arith.cmpi eq, %29, %36 : vector<8x8xi32>
    %38 = arith.ori %34, %37 : vector<8x8xi1>
    %39 = vector.broadcast %23 : vector<8x1xf32> to vector<8x8xf32>
    %40 = arith.mulf %18, %39 : vector<8x8xf32>
    %cst_13 = arith.constant 1.000000e+00 : f32
    %41 = vector.broadcast %cst_13 : f32 to vector<8x8xf32>
    %42 = arith.subf %41, %40 : vector<8x8xf32>
    %43 = math.log %42 : vector<8x8xf32>
    %cst_14 = arith.constant 0.000000e+00 : f32
    %44 = vector.broadcast %cst_14 : f32 to vector<8x8xf32>
    %45 = arith.select %38, %44, %43 : vector<8x8xi1>, vector<8x8xf32>
    %cst_15 = arith.constant dense<0.000000e+00> : vector<8xf32>
    %46 = vector.multi_reduction <add>, %45, %cst_15 [1] : vector<8x8xf32> to vector<8xf32>
    %47 = vector.shape_cast %46 : vector<8xf32> to vector<8x1xf32>
    %48 = math.log %24 : vector<8x1xf32>
    %c0_16 = arith.constant 0 : index
    %c0_17 = arith.constant 0 : index
    %49 = vector.load %arg4[%c0_16, %c0_17] : memref<8x1xf32, #tpu.memory_space<vmem>>, vector<8x1xf32>
    tpu.vector_store %arg4[%c0_16, %c0_17], %24 {strides = array<i32>} : memref<8x1xf32, #tpu.memory_space<vmem>>, vector<8x1xf32>,
    %cst_18 = arith.constant 1.000000e+00 : f32
    %50 = vector.broadcast %cst_18 : f32 to vector<8x1xf32>
    %51 = arith.mulf %50, %47 : vector<8x1xf32>
    %52 = arith.addf %48, %51 : vector<8x1xf32>
    %c0_19 = arith.constant 0 : index
    %c0_20 = arith.constant 0 : index
    %53 = vector.load %arg5[%c0_19, %c0_20] : memref<8x1xf32, #tpu.memory_space<vmem>>, vector<8x1xf32>
    tpu.vector_store %arg5[%c0_19, %c0_20], %52 {strides = array<i32>} : memref<8x1xf32, #tpu.memory_space<vmem>>, vector<8x1xf32>,
    return
  }
  func.func @transform_0(%arg0: i32) -> (i32, i32) {
    %c0_i32 = arith.constant 0 : i32
    %c0_i32_0 = arith.constant 0 : i32
    return %arg0, %c0_i32 : i32, i32
  }
  func.func @transform_1(%arg0: i32) -> (i32, i32) {
    %c0_i32 = arith.constant 0 : i32
    %c0_i32_0 = arith.constant 0 : i32
    return %arg0, %c0_i32 : i32, i32
  }
  func.func @transform_2(%arg0: i32) -> (i32, i32) {
    %c0_i32 = arith.constant 0 : i32
    %c0_i32_0 = arith.constant 0 : i32
    %c0_i32_1 = arith.constant 0 : i32
    return %c0_i32, %c0_i32_0 : i32, i32
  }
  func.func @transform_3(%arg0: i32) -> (i32, i32) {
    %c0_i32 = arith.constant 0 : i32
    %c0_i32_0 = arith.constant 0 : i32
    return %arg0, %c0_i32 : i32, i32
  }
  func.func @transform_4(%arg0: i32) -> (i32, i32) {
    %c0_i32 = arith.constant 0 : i32
    %c0_i32_0 = arith.constant 0 : i32
    return %arg0, %c0_i32 : i32, i32
  }
}

</mosaic_0001>

<llo_original>
// kernel: tpu_custom_call.1
$region0: #{tpu_custom_call.1}
  #allocation0 [shape = 'u32[]', space=smem, size = 0x4, offset = 0x4, fixed_abs, tag = 'smem constant byte address 0x4 - core index']
  #allocation1 [shape = 'u32[72,128]{1,0:T(1,128)}', space=vmem, size = 0x9000, scoped, tag = 'internal scratch']
  %s0 = inlined_call_operand.vmem [shape: f32[8,32], index: 0, kind: input, shape index: {}]
  %s1 = inlined_call_operand.vmem [shape: f32[8,32], index: 1, kind: input, shape index: {}]
  %s2 = inlined_call_operand.vmem [shape: f32[32,8], index: 2, kind: input, shape index: {}]
  %s3 = inlined_call_operand.vmem [shape: f32[8,1], index: 3, kind: output, shape index: {0}]
  %s4 = inlined_call_operand.vmem [shape: f32[8,1], index: 4, kind: output, shape index: {1}]
  %5 = xla_tuple %s3, %s4
  %s6 = sld [smem:[#allocation0]]
  $region30: #{tpu_custom_call.1} parent=0
    _
  %s8 = ssub.s32 1, %s6
  %s9 = scalar_select 0, %s8, %s6
  // Predicated region
  $region2: #{tpu_custom_call.1} parent=0 // pred_check
    _
  $region3: #{tpu_custom_call.1} parent=0 // pred_check_branch
    %11 = sbr.rel (0) target = $region5
  $region4: #{tpu_custom_call.1} parent=0 // pred_region
    _
  $region5: #{tpu_custom_call.1} parent=0 // pred_fallthru
    _
  // Predicated region
  $region6: #{tpu_custom_call.1} parent=0 // pred_check
    _
  $region7: #{tpu_custom_call.1} parent=0 // pred_check_branch
    %13 = sbr.rel (0) target = $region9
  $region8: #{tpu_custom_call.1} parent=0 // pred_region
    _
  $region9: #{tpu_custom_call.1} parent=0 // pred_fallthru
    _
  // Predicated region
  $region10: #{tpu_custom_call.1} parent=0 // pred_check
    _
  $region11: #{tpu_custom_call.1} parent=0 // pred_check_branch
    %15 = sbr.rel (0) target = $region13
  $region12: #{tpu_custom_call.1} parent=0 // pred_region
    _
  $region13: #{tpu_custom_call.1} parent=0 // pred_fallthru
    _
  %v16 = vld [vmem:[%s0] sm:$0xff]
  %v17 = vld [vmem:[%s1] sm:$0xff]
  %v18 = vmul.f32 %v16, %v17
  %vm19 = vcmask 261120
  %v20 = vsel %vm19, %v18, 0.0
  %21 = vadd.xlane.f32.xlu0 %v20
  %v22 = vpop.xlane.xlu0 %21
  %v23 = vmul.f32 %v22, 10.0
  %v24 = vmul.f32 %v23, 1.442695
  %v25 = vpow.pop %v24
  %v26 = vmul.f32 %v16, %v16
  %v27 = vsel %vm19, %v26, 0.0
  %28 = vadd.xlane.f32.xlu0 %v27
  %v29 = vpop.xlane.xlu0 %28
  %v30 = vmul.f32 %v29, 10.0
  %v31 = vmul.f32 %v30, 1.442695
  %v32 = vpow.pop %v31
  %v33 = vmul.f32 %v16, 10.0
  %v34 = vld [vmem:[%s2] sm:$0xff]
  %v35 = vld [vmem:[%s2 + $0x8] sm:$0xff]
  %v36 = vld [vmem:[%s2 + $0x10] sm:$0xff]
  %v37 = vld [vmem:[%s2 + $0x18] sm:$0xff]
  %v39 = vsel %vm19, %v33, 0
  %41 = vmatpush.msra.mxu0 0.0
  %42 = vmatpush.msra.mxu0 0.0
  %43 = vmatpush.msra.mxu0 0.0
  %44 = vmatpush.msra.mxu0 0.0
  %45 = vmatpush.msra.mxu0 0.0
  %46 = vmatpush.msra.mxu0 0.0
  %47 = vmatpush.msra.mxu0 0.0
  %48 = vmatpush.msra.mxu0 0.0
  %49 = vmatpush.msra.mxu0 0.0
  %50 = vmatpush.msra.mxu0 0.0
  %51 = vmatpush.msra.mxu0 0.0
  %52 = vmatpush.msra.mxu0 0.0
  %53 = vmatpush.msra.mxu0 %v37
  %54 = vmatpush.msra.mxu0 %v36
  %55 = vmatpush.msra.mxu0 %v35
  %56 = vmatpush.msra.mxu0 %v34
  %57 = vmatmul.f32.gmra.mxu0 %v39
  %v58 = vpop.f32.mrf.mxu0
  %v59 = vadd.f32 0.0, %v58
  %60 = vdwg.mxu0
  %v61 = vmul.f32 %v59, 1.442695
  %v62 = vpow.pop %v61
  %vm63 = vcmask 64512
  %v64 = vsel %vm63, %v62, 0.0
  %65 = vadd.xlane.f32.xlu0 %v64
  %v66 = vpop.xlane.xlu0 %65
  %v67 = vsub.f32 %v66, %v32
  %v68 = vrcp.pop %v67
  %v69 = vmul.f32 %v67, %v68
  %v70 = vsub.f32 1.0, %v69
  %v71 = vmul.f32 %v68, %v70
  %v72 = vadd.f32 %v68, %v71
  %vm73 = vweird.f32 %v67
  %vm74 = vweird.f32 %v68
  %vm75 = vmor %vm73, %vm74
  %v76 = vsel %vm75, %v68, %v72
  %v77 = vand.u32 2147483647, %v67
  %vm78 = vcmp.eq.f32.partialorder %v77, 8.507059e+37
  %v79 = vand.u32 %v67, 2147483648
  %v80 = vor.u32 1.1754944e-38, %v79
  %v81 = vsel %vm78, %v80, %v76
  %v82 = vmul.f32 1.0, %v81
  %v83 = vmul.f32 %v25, %v82
  %s84 = smul.u32 0, 8
  %v85 = vlaneseq
  %v86 = vshrl.u32 %v85, 7
  %v87 = vstv %s84
  %v88 = vadd.s32 %v87, %v86
  %v89 = vlaneseq
  %v90 = vand.u32 %v89, 127
  %vm91 = vcmp.eq.s32.totalorder %v90, %v88
  %v92 = vadd.s32 %v88, 4
  %vm93 = vcmp.eq.s32.totalorder %v90, %v92
  %vm94 = vmor %vm91, %vm93
  %v95 = vsub.s32 %v88, 4
  %vm96 = vcmp.eq.s32.totalorder %v90, %v95
  %vm97 = vmor %vm94, %vm96
  %v98 = vmul.f32 %v62, %v82
  %v99 = vsub.f32 1.0, %v98
  %v100 = vlog2.pop %v99
  %v101 = vmul.f32 %v100, 0.6931472
  %v102 = vsel %vm97, 0.0, %v101
  %v103 = vsel %vm63, %v102, 0.0
  %104 = vadd.xlane.f32.xlu0 %v103
  %v105 = vpop.xlane.xlu0 %104
  %v106 = vlog2.pop %v83
  %v107 = vmul.f32 %v106, 0.6931472
  %vm108 = vcmask 7168
  %109 = vst.msk [vmem:[%s3] sm:$0xff] %vm108, %v83
  %v110 = vadd.f32 %v107, %v105
  %111 = vst.msk [vmem:[%s4] sm:$0xff] %vm108, %v110
  // Predicated region
  $region14: #{tpu_custom_call.1} parent=0 // pred_check
    _
  $region15: #{tpu_custom_call.1} parent=0 // pred_check_branch
    %113 = sbr.rel (0) target = $region17
  $region16: #{tpu_custom_call.1} parent=0 // pred_region
    _
  $region17: #{tpu_custom_call.1} parent=0 // pred_fallthru
    _
  // Predicated region
  $region18: #{tpu_custom_call.1} parent=0 // pred_check
    _
  $region19: #{tpu_custom_call.1} parent=0 // pred_check_branch
    %115 = sbr.rel (0) target = $region21
  $region20: #{tpu_custom_call.1} parent=0 // pred_region
    _
  $region21: #{tpu_custom_call.1} parent=0 // pred_fallthru
    _
  // Predicated region
  $region22: #{tpu_custom_call.1} parent=0 // pred_check
    _
  $region23: #{tpu_custom_call.1} parent=0 // pred_check_branch
    %117 = sbr.rel (0) target = $region25
  $region24: #{tpu_custom_call.1} parent=0 // pred_region
    _
  $region25: #{tpu_custom_call.1} parent=0 // pred_fallthru
    _
  // Predicated region
  $region26: #{tpu_custom_call.1} parent=0 // pred_check
    _
  $region27: #{tpu_custom_call.1} parent=0 // pred_check_branch
    %119 = sbr.rel (0) target = $region29
  $region28: #{tpu_custom_call.1} parent=0 // pred_region
    _
  $region29: #{tpu_custom_call.1} parent=0 // pred_fallthru
    _

</llo_original>
